<compile_context>
chip_gen: v6e
topology: v6e:2x2x1
jax: 0.10.0
libtpu: 0.0.40
codegen_flags: <defaults>
</compile_context>

<pallas_src>
import functools

import jax
import jax.numpy as jnp
from jax import lax
from jax.experimental import pallas as pl
from jax.experimental.pallas import tpu as pltpu

_LANES = 128


def _round_up(x, m):
    return ((x + m - 1) // m) * m


def _poly_match_kernel(pred_ref, gt_ref, out_ref, gt2_ref, acc_ref, *, pnum, group):
    """One grid step == one block of TB polygons (samples on the lane axis).

    pred_ref: (2P, TB)   predicted polygons, (point, coord) flattened on sublanes
    gt_ref:   (2P, TB)   ground-truth polygons, same layout
    out_ref:  (1, TB)    per-sample min-over-shifts mean smooth-L1
    gt2_ref:  (4P, TB)   VMEM scratch: gt stacked twice so every cyclic shift is a
                         contiguous sublane window (no roll / gather needed)
    acc_ref:  (1, TB)    VMEM scratch: running min over shifts
    """
    two_p = 2 * pnum
    tb = pred_ref.shape[1]

    # Prologue: build the doubled gt once per grid step (gt streamed from HBM only once).
    gsrc = gt_ref[...]                                     # (2P, TB)
    gt2_ref[pl.ds(0, two_p), :] = gsrc
    gt2_ref[pl.ds(two_p, two_p), :] = gsrc

    acc_ref[...] = jnp.full((1, tb), jnp.inf, dtype=jnp.float32)

    num_groups = pnum // group

    def body(gi, carry):
        # Group base is a multiple of 2*group sublanes (== 8 for group=4), so the dynamic
        # part of every window start is tile-aligned; in-group offsets are small statics.
        base = pl.multiple_of(gi * (2 * group), 2 * group)
        # Re-read pred from VMEM each group instead of hoisting it across the whole shift
        # loop (keeps vreg live ranges short; re-loads are hidden under the VPU work).
        pred = pred_ref[...]                               # (2P, TB)

        dis_g = None
        for c in range(group):                             # static python loop: offsets +0,+2,...
            gshift = gt2_ref[pl.ds(base + 2 * c, two_p), :]   # gt shifted by (group*gi + c) points
            d = pred - gshift
            ad = jnp.abs(d)
            m = jnp.minimum(ad, 1.0)
            sl1 = m * (ad - 0.5 * m)                       # smooth-L1 (beta=1), branch-free
            dis = jnp.sum(sl1, axis=0, keepdims=True)      # (1, TB): sum over 2P coords
            dis_g = dis if dis_g is None else jnp.minimum(dis_g, dis)

        acc_ref[...] = jnp.minimum(acc_ref[...], dis_g)    # running min over shifts
        return carry

    lax.fori_loop(0, num_groups, body, 0)                  # no full unroll (vreg pressure)

    # 1/pnum applied once after the min (sum -> mean over the pnum matched points).
    out_ref[...] = acc_ref[...] * (1.0 / pnum)


def _pick_tiling(batch, pnum):
    """Choose TB (lane columns / samples per grid step) and a VMEM limit, generation-aware."""
    two_p = 2 * pnum
    try:
        vmem_cap = int(getattr(pltpu.get_tpu_info(), "vmem_capacity_bytes", 64 << 20))
    except Exception:  # pragma: no cover - conservative fallback
        vmem_cap = 64 << 20
    # Scoped budget: ~16 MiB on v7x (64 MiB physical per TC), ~24 MiB on v5e/v6e (128 MiB).
    budget = min(vmem_cap // 4, 24 << 20)

    # Bytes resident per lane-column: 2 inputs x 2 pipeline buffers x 2P + doubled-gt scratch
    # (4P) + small acc/out buffers.
    per_lane = 24 * two_p + 64
    tb = 8192
    while tb > _LANES and per_lane * tb > budget:
        tb //= 2
    tb = max(_LANES, min(tb, _round_up(batch, _LANES)))

    # Prefer >= 2 batch blocks (both TensorCores usable on multi-core chips) as long as the
    # tile stays big enough to amortize the ~0.35us per-step overhead.
    if _round_up(batch, tb) // tb < 2 and tb >= 2048:
        tb = _round_up(tb // 2, _LANES)

    est = per_lane * tb + (1 << 20)
    vmem_limit = int(min(max(2 * est, 16 << 20), vmem_cap // 2))
    return tb, vmem_limit


def poly_matching_loss(pred, gt):
    """Pallas implementation of PolyMatchingLoss(pnum).forward(pred, gt) (tensor path, L1)."""
    # TODO(synk): the ragged list-of-polygons branch of forward() (host-side Python loop with
    # try/except) and the loss_type='L2' branch are not implemented; this is the L1 tensor path.
    pred = pred.astype(jnp.float32)
    gt = gt.astype(jnp.float32)
    B, P, two = pred.shape
    assert two == 2 and gt.shape == pred.shape

    two_p = 2 * P
    group = 4 if P % 4 == 0 else (2 if P % 2 == 0 else 1)
    tb, vmem_limit = _pick_tiling(B, P)
    b_pad = _round_up(B, tb)
    grid_b = b_pad // tb

    # Layout glue: flatten (point, coord), pad batch to a multiple of the lane tile, and
    # transpose so samples sit on the lane axis.
    # TODO(synk): fuse this pad+transpose into the producer / move it in-kernel to avoid the
    # extra HBM pass over the inputs.
    pred_flat = pred.reshape(B, two_p)
    gt_flat = gt.reshape(B, two_p)
    if b_pad != B:
        pad = ((0, b_pad - B), (0, 0))
        pred_flat = jnp.pad(pred_flat, pad)
        gt_flat = jnp.pad(gt_flat, pad)
    pred_t = pred_flat.T                                   # (2P, Bp)
    gt_t = gt_flat.T                                       # (2P, Bp)

    kernel = functools.partial(_poly_match_kernel, pnum=P, group=group)
    cost = pl.CostEstimate(
        flops=int(8 * B * P * two_p),
        transcendentals=0,
        bytes_accessed=int((2 * B * two_p + B) * 4),
    )

    per_sample = pl.pallas_call(
        kernel,
        out_shape=jax.ShapeDtypeStruct((1, b_pad), jnp.float32),
        grid=(grid_b,),
        in_specs=[
            pl.BlockSpec((two_p, tb), lambda g: (0, g)),
            pl.BlockSpec((two_p, tb), lambda g: (0, g)),
        ],
        out_specs=pl.BlockSpec((1, tb), lambda g: (0, g)),
        scratch_shapes=[
            pltpu.VMEM((2 * two_p, tb), jnp.float32),      # doubled gt (cyclic-shift windows)
            pltpu.VMEM((1, tb), jnp.float32),              # running min over shifts
        ],
        compiler_params=pltpu.CompilerParams(
            dimension_semantics=("parallel",),             # TODO(synk): CORE_PARALLEL on v7x
            vmem_limit_bytes=vmem_limit,
        ),
        cost_estimate=cost,
    )(pred_t, gt_t)

    # Final mean over the (unpadded) batch in plain JAX (padded lanes discarded).
    return per_sample[0, :B].mean()


def _reference_loss(pred, gt):
    """Pure-JAX reference mirroring the PyTorch forward (L1 branch)."""
    B, P, _ = pred.shape
    idx = (jnp.arange(P)[:, None] + jnp.arange(P)[None, :]) % P
    gt_expand = gt[:, idx, :]                              # (B, P, P, 2)
    diff = pred[:, None, :, :] - gt_expand
    ad = jnp.abs(diff)
    sl1 = jnp.where(ad < 1.0, 0.5 * diff * diff, ad - 0.5)
    dis = sl1.sum(-1).mean(-1)                             # (B, P)
    return jnp.mean(jnp.min(dis, axis=1))


if __name__ == "__main__":
    # Small, deterministic example: batch=2 polygons with pnum=16 points each.
    pnum = 16
    batch = 2
    key = jax.random.PRNGKey(0)
    k1, k2 = jax.random.split(key)
    # Scale so both branches of smooth-L1 (|x|<1 and |x|>=1) are exercised.
    pred = jax.random.uniform(k1, (batch, pnum, 2), jnp.float32) * 4.0
    gt = jax.random.uniform(k2, (batch, pnum, 2), jnp.float32) * 4.0

    loss = jax.block_until_ready(poly_matching_loss(pred, gt))
    ref = jax.block_until_ready(_reference_loss(pred, gt))

    assert jnp.allclose(loss, ref, rtol=1e-5, atol=1e-5), (loss, ref)
    print("KERNEL_OK")
</pallas_src>

<mosaic_0001>
module attributes {stable_mosaic.version = 11 : i64} {
  func.func @_poly_match_kernel(%arg0: i32, %arg1: memref<32x128xf32, #tpu.memory_space<vmem>>, %arg2: memref<32x128xf32, #tpu.memory_space<vmem>>, %arg3: memref<1x128xf32, #tpu.memory_space<vmem>>, %arg4: memref<64x128xf32, #tpu.memory_space<vmem>>, %arg5: memref<1x128xf32, #tpu.memory_space<vmem>>) attributes {dimension_semantics = [#tpu.dimension_semantics<parallel>], iteration_bounds = array<i64: 1>, scalar_prefetch = 0 : i64, scratch_operands = 2 : i64, tpu.core_type = #tpu.core_type<tc>, window_params = [{transform_indices = @transform_0, window_bounds = array<i64: 32, 128>}, {transform_indices = @transform_1, window_bounds = array<i64: 32, 128>}, {transform_indices = @transform_2, window_bounds = array<i64: 1, 128>}]} {
    %c0 = arith.constant 0 : index
    %c0_0 = arith.constant 0 : index
    %0 = vector.load %arg2[%c0, %c0_0] : memref<32x128xf32, #tpu.memory_space<vmem>>, vector<32x128xf32>
    %c0_1 = arith.constant 0 : index
    %c0_2 = arith.constant 0 : index
    %1 = vector.load %arg4[%c0_1, %c0_2] : memref<64x128xf32, #tpu.memory_space<vmem>>, vector<32x128xf32>
    tpu.vector_store %arg4[%c0_1, %c0_2], %0 {strides = array<i32>} : memref<64x128xf32, #tpu.memory_space<vmem>>, vector<32x128xf32>,
    %c32 = arith.constant 32 : index
    %c0_3 = arith.constant 0 : index
    %2 = vector.load %arg4[%c32, %c0_3] : memref<64x128xf32, #tpu.memory_space<vmem>>, vector<32x128xf32>
    tpu.vector_store %arg4[%c32, %c0_3], %0 {strides = array<i32>} : memref<64x128xf32, #tpu.memory_space<vmem>>, vector<32x128xf32>,
    %cst = arith.constant 0x7F800000 : f32
    %3 = vector.broadcast %cst : f32 to vector<1x128xf32>
    %c0_4 = arith.constant 0 : index
    %c0_5 = arith.constant 0 : index
    %4 = vector.load %arg5[%c0_4, %c0_5] : memref<1x128xf32, #tpu.memory_space<vmem>>, vector<1x128xf32>
    tpu.vector_store %arg5[%c0_4, %c0_5], %3 {strides = array<i32>} : memref<1x128xf32, #tpu.memory_space<vmem>>, vector<1x128xf32>,
    %c0_i32 = arith.constant 0 : i32
    %c4_i32 = arith.constant 4 : i32
    %5 = arith.addi %c0_i32, %c4_i32 : i32
    %c1_i32 = arith.constant 1 : i32
    scf.for %arg6 = %c0_i32 to %5 step %c1_i32  : i32 {
      %c8_i32 = arith.constant 8 : i32
      %10 = arith.muli %arg6, %c8_i32 : i32
      %11 = tpu.assume_multiple %10, 8 : i32
      %c0_12 = arith.constant 0 : index
      %c0_13 = arith.constant 0 : index
      %12 = vector.load %arg1[%c0_12, %c0_13] : memref<32x128xf32, #tpu.memory_space<vmem>>, vector<32x128xf32>
      %c0_i32_14 = arith.constant 0 : i32
      %13 = arith.addi %11, %c0_i32_14 : i32
      %14 = arith.index_cast %13 : i32 to index
      %c0_15 = arith.constant 0 : index
      %15 = vector.load %arg4[%14, %c0_15] : memref<64x128xf32, #tpu.memory_space<vmem>>, vector<32x128xf32>
      %16 = arith.subf %12, %15 : vector<32x128xf32>
      %17 = math.absf %16 : vector<32x128xf32>
      %cst_16 = arith.constant 1.000000e+00 : f32
      %18 = vector.broadcast %cst_16 : f32 to vector<32x128xf32>
      %19 = arith.minimumf %17, %18 : vector<32x128xf32>
      %cst_17 = arith.constant 5.000000e-01 : f32
      %20 = vector.broadcast %cst_17 : f32 to vector<32x128xf32>
      %21 = arith.mulf %20, %19 : vector<32x128xf32>
      %22 = arith.subf %17, %21 : vector<32x128xf32>
      %23 = arith.mulf %19, %22 : vector<32x128xf32>
      %cst_18 = arith.constant dense<0.000000e+00> : vector<128xf32>
      %24 = vector.multi_reduction <add>, %23, %cst_18 [0] : vector<32x128xf32> to vector<128xf32>
      %25 = vector.shape_cast %24 : vector<128xf32> to vector<1x128xf32>
      %c2_i32 = arith.constant 2 : i32
      %26 = arith.addi %11, %c2_i32 : i32
      %27 = arith.index_cast %26 : i32 to index
      %c0_19 = arith.constant 0 : index
      %28 = vector.load %arg4[%27, %c0_19] : memref<64x128xf32, #tpu.memory_space<vmem>>, vector<32x128xf32>
      %29 = arith.subf %12, %28 : vector<32x128xf32>
      %30 = math.absf %29 : vector<32x128xf32>
      %cst_20 = arith.constant 1.000000e+00 : f32
      %31 = vector.broadcast %cst_20 : f32 to vector<32x128xf32>
      %32 = arith.minimumf %30, %31 : vector<32x128xf32>
      %cst_21 = arith.constant 5.000000e-01 : f32
      %33 = vector.broadcast %cst_21 : f32 to vector<32x128xf32>
      %34 = arith.mulf %33, %32 : vector<32x128xf32>
      %35 = arith.subf %30, %34 : vector<32x128xf32>
      %36 = arith.mulf %32, %35 : vector<32x128xf32>
      %cst_22 = arith.constant dense<0.000000e+00> : vector<128xf32>
      %37 = vector.multi_reduction <add>, %36, %cst_22 [0] : vector<32x128xf32> to vector<128xf32>
      %38 = vector.shape_cast %37 : vector<128xf32> to vector<1x128xf32>
      %39 = arith.minimumf %25, %38 : vector<1x128xf32>
      %c4_i32_23 = arith.constant 4 : i32
      %40 = arith.addi %11, %c4_i32_23 : i32
      %41 = arith.index_cast %40 : i32 to index
      %c0_24 = arith.constant 0 : index
      %42 = vector.load %arg4[%41, %c0_24] : memref<64x128xf32, #tpu.memory_space<vmem>>, vector<32x128xf32>
      %43 = arith.subf %12, %42 : vector<32x128xf32>
      %44 = math.absf %43 : vector<32x128xf32>
      %cst_25 = arith.constant 1.000000e+00 : f32
      %45 = vector.broadcast %cst_25 : f32 to vector<32x128xf32>
      %46 = arith.minimumf %44, %45 : vector<32x128xf32>
      %cst_26 = arith.constant 5.000000e-01 : f32
      %47 = vector.broadcast %cst_26 : f32 to vector<32x128xf32>
      %48 = arith.mulf %47, %46 : vector<32x128xf32>
      %49 = arith.subf %44, %48 : vector<32x128xf32>
      %50 = arith.mulf %46, %49 : vector<32x128xf32>
      %cst_27 = arith.constant dense<0.000000e+00> : vector<128xf32>
      %51 = vector.multi_reduction <add>, %50, %cst_27 [0] : vector<32x128xf32> to vector<128xf32>
      %52 = vector.shape_cast %51 : vector<128xf32> to vector<1x128xf32>
      %53 = arith.minimumf %39, %52 : vector<1x128xf32>
      %c6_i32 = arith.constant 6 : i32
      %54 = arith.addi %11, %c6_i32 : i32
      %55 = arith.index_cast %54 : i32 to index
      %c0_28 = arith.constant 0 : index
      %56 = vector.load %arg4[%55, %c0_28] : memref<64x128xf32, #tpu.memory_space<vmem>>, vector<32x128xf32>
      %57 = arith.subf %12, %56 : vector<32x128xf32>
      %58 = math.absf %57 : vector<32x128xf32>
      %cst_29 = arith.constant 1.000000e+00 : f32
      %59 = vector.broadcast %cst_29 : f32 to vector<32x128xf32>
      %60 = arith.minimumf %58, %59 : vector<32x128xf32>
      %cst_30 = arith.constant 5.000000e-01 : f32
      %61 = vector.broadcast %cst_30 : f32 to vector<32x128xf32>
      %62 = arith.mulf %61, %60 : vector<32x128xf32>
      %63 = arith.subf %58, %62 : vector<32x128xf32>
      %64 = arith.mulf %60, %63 : vector<32x128xf32>
      %cst_31 = arith.constant dense<0.000000e+00> : vector<128xf32>
      %65 = vector.multi_reduction <add>, %64, %cst_31 [0] : vector<32x128xf32> to vector<128xf32>
      %66 = vector.shape_cast %65 : vector<128xf32> to vector<1x128xf32>
      %67 = arith.minimumf %53, %66 : vector<1x128xf32>
      %c0_32 = arith.constant 0 : index
      %c0_33 = arith.constant 0 : index
      %68 = vector.load %arg5[%c0_32, %c0_33] : memref<1x128xf32, #tpu.memory_space<vmem>>, vector<1x128xf32>
      %69 = arith.minimumf %68, %67 : vector<1x128xf32>
      %c0_34 = arith.constant 0 : index
      %c0_35 = arith.constant 0 : index
      %70 = vector.load %arg5[%c0_34, %c0_35] : memref<1x128xf32, #tpu.memory_space<vmem>>, vector<1x128xf32>
      tpu.vector_store %arg5[%c0_34, %c0_35], %69 {strides = array<i32>} : memref<1x128xf32, #tpu.memory_space<vmem>>, vector<1x128xf32>,
    }
    %c4_i32_6 = arith.constant 4 : i32
    %c0_7 = arith.constant 0 : index
    %c0_8 = arith.constant 0 : index
    %6 = vector.load %arg5[%c0_7, %c0_8] : memref<1x128xf32, #tpu.memory_space<vmem>>, vector<1x128xf32>
    %cst_9 = arith.constant 6.250000e-02 : f32
    %7 = vector.broadcast %cst_9 : f32 to vector<1x128xf32>
    %8 = arith.mulf %6, %7 : vector<1x128xf32>
    %c0_10 = arith.constant 0 : index
    %c0_11 = arith.constant 0 : index
    %9 = vector.load %arg3[%c0_10, %c0_11] : memref<1x128xf32, #tpu.memory_space<vmem>>, vector<1x128xf32>
    tpu.vector_store %arg3[%c0_10, %c0_11], %8 {strides = array<i32>} : memref<1x128xf32, #tpu.memory_space<vmem>>, vector<1x128xf32>,
    return
  }
  func.func @transform_0(%arg0: i32) -> (i32, i32) {
    %c0_i32 = arith.constant 0 : i32
    %c0_i32_0 = arith.constant 0 : i32
    return %c0_i32, %arg0 : i32, i32
  }
  func.func @transform_1(%arg0: i32) -> (i32, i32) {
    %c0_i32 = arith.constant 0 : i32
    %c0_i32_0 = arith.constant 0 : i32
    return %c0_i32, %arg0 : i32, i32
  }
  func.func @transform_2(%arg0: i32) -> (i32, i32) {
    %c0_i32 = arith.constant 0 : i32
    %c0_i32_0 = arith.constant 0 : i32
    return %c0_i32, %arg0 : i32, i32
  }
}

</mosaic_0001>

<llo_original>
// kernel: tpu_custom_call.1
$region0: #{tpu_custom_call.1}
  #allocation0 [shape = 'u32[]', space=smem, size = 0x4, offset = 0x4, fixed_abs, tag = 'smem constant byte address 0x4 - core index']
  #allocation1 [shape = 'u32[144,128]{1,0:T(1,128)}', space=vmem, size = 0x12000, scoped, tag = 'internal scratch']
  #allocation2 [shape = 'f32[64,128]{1,0:T(8,128)}', space=vmem, size = 0x8000, scoped, tag = 'scratch operand']
  #allocation3 [shape = 'f32[1,128]{1,0:T(1,128)}', space=vmem, size = 0x200, scoped, tag = 'scratch operand']
  %s0 = inlined_call_operand.hbm [shape: f32[32,128], index: 0, kind: input, shape index: {}]
  %s1 = inlined_call_operand.hbm [shape: f32[32,128], index: 1, kind: input, shape index: {}]
  %s2 = inlined_call_operand.hbm [shape: f32[1,128], index: 2, kind: output, shape index: {}]
  %s3 = sld [smem:[#allocation0]]
  $region33: #{tpu_custom_call.1} parent=0
    _
  %s5 = ssub.s32 1, %s3
  %s6 = scalar_select 0, %s5, %s3
  $region1: #{tpu_custom_call.1} parent=0
    #allocation4 [shape = 'u8[16384]{0}', space=vmem, size = 0x4000, scoped, tag = 'input window, operand 0, single buffered']
    #allocation5 [shape = 's32[1]{0}', space=sflag, size = 0x4, scoped, tag = 'scoped memory for tpu_custom_call.1']
    #allocation6 [shape = 's32[1]{0}', space=sflag, size = 0x4, scoped, tag = 'scoped memory for tpu_custom_call.1']
    #allocation7 [shape = 'u8[16384]{0}', space=vmem, size = 0x4000, scoped, tag = 'input window, operand 1, single buffered']
    #allocation8 [shape = 's32[1]{0}', space=sflag, size = 0x4, scoped, tag = 'scoped memory for tpu_custom_call.1']
    #allocation9 [shape = 'u8[512]{0}', space=vmem, size = 0x400, scoped, tag = 'output window, operand 0, single buffered']
    %7 = vsyncpa [#allocation5], 0
    %8 = vsyncpa [#allocation8], 0
    %9 = vsyncpa [#allocation6], 0
    // Predicated region
    $region2: #{tpu_custom_call.1} parent=1 // pred_check
      _
    $region3: #{tpu_custom_call.1} parent=1 // pred_check_branch
      %11 = sbr.rel (0) target = $region5
    $region4: #{tpu_custom_call.1} parent=1 // pred_region
      %s13 = ssub.s32 512, 512
      %14 = vsyncadd [#allocation5], %s13
      %s15 = sshll.u32 [#allocation4], 4
      %s16 = int_to_ptr.vmem [resolvable:$true] %s15
      %21 = dma.hbm_to_vmem [thread:$0]  %s0, 512, %s16, [#allocation5], 128, 128, 8
    $region5: #{tpu_custom_call.1} parent=1 // pred_fallthru
      _
    // Predicated region
    $region6: #{tpu_custom_call.1} parent=1 // pred_check
      _
    $region7: #{tpu_custom_call.1} parent=1 // pred_check_branch
      %23 = sbr.rel (0) target = $region9
    $region8: #{tpu_custom_call.1} parent=1 // pred_region
      %s25 = ssub.s32 512, 512
      %26 = vsyncadd [#allocation8], %s25
      %s27 = sshll.u32 [#allocation7], 4
      %s28 = int_to_ptr.vmem [resolvable:$true] %s27
      %33 = dma.hbm_to_vmem [thread:$0]  %s1, 512, %s28, [#allocation8], 128, 128, 8
    $region9: #{tpu_custom_call.1} parent=1 // pred_fallthru
      _
    // Predicated region
    $region10: #{tpu_custom_call.1} parent=1 // pred_check
      _
    $region11: #{tpu_custom_call.1} parent=1 // pred_check_branch
      %35 = sbr.rel (0) target = $region13
    $region12: #{tpu_custom_call.1} parent=1 // pred_region
      %36 = dma.done [#allocation5], 512
    $region13: #{tpu_custom_call.1} parent=1 // pred_fallthru
      _
    // Predicated region
    $region14: #{tpu_custom_call.1} parent=1 // pred_check
      _
    $region15: #{tpu_custom_call.1} parent=1 // pred_check_branch
      %38 = sbr.rel (0) target = $region17
    $region16: #{tpu_custom_call.1} parent=1 // pred_region
      %39 = dma.done [#allocation8], 512
    $region17: #{tpu_custom_call.1} parent=1 // pred_fallthru
      _
    %v40 = vld [vmem:[#allocation7] sm:$0xff]
    %v41 = vld [vmem:[#allocation7 + $0x8] sm:$0xff]
    %v42 = vld [vmem:[#allocation7 + $0x10] sm:$0xff]
    %v43 = vld [vmem:[#allocation7 + $0x18] sm:$0xff]
    %44 = vst [vmem:[#allocation2] sm:$0xff] %v40
    %45 = vst [vmem:[#allocation2 + $0x8] sm:$0xff] %v41
    %46 = vst [vmem:[#allocation2 + $0x10] sm:$0xff] %v42
    %47 = vst [vmem:[#allocation2 + $0x18] sm:$0xff] %v43
    %48 = vst [vmem:[#allocation2 + $0x20] sm:$0xff] %v40
    %49 = vst [vmem:[#allocation2 + $0x28] sm:$0xff] %v41
    %50 = vst [vmem:[#allocation2 + $0x30] sm:$0xff] %v42
    %51 = vst [vmem:[#allocation2 + $0x38] sm:$0xff] %v43
    %52 = vst [vmem:[#allocation3] sm:$0x1] inf
    loop: start=0, step=1, limit=4
    $region18: #{tpu_custom_call.1} parent=1 // loop_pre_header
      _
    $region19: #{tpu_custom_call.1} parent=1 // loop_header
      %s54 = sphi 0, %s58
      %p55 = scmp.ge.s32.totalorder %s54, 4
    $region20: #{tpu_custom_call.1} parent=1 // loop_header_branch
      %57 = sbr.rel (%p55) target = $region24
    $region21: #{tpu_custom_call.1} parent=1 // loop_body
      %s59 = smul.u32 %s54, 8
      %v60 = vld [vmem:[#allocation4] sm:$0xff]
      %v61 = vld [vmem:[#allocation4 + $0x8] sm:$0xff]
      %v62 = vld [vmem:[#allocation4 + $0x10] sm:$0xff]
      %v63 = vld [vmem:[#allocation4 + $0x18] sm:$0xff]
      %s64 = scalar_lea.vmem [#allocation2], %s59
      %v65 = vld [vmem:[%s64] sm:$0xff]
      %v66 = vld [vmem:[%s64 + $0x8] sm:$0xff]
      %v67 = vld [vmem:[%s64 + $0x10] sm:$0xff]
      %v68 = vld [vmem:[%s64 + $0x18] sm:$0xff]
      %v69 = vsub.f32 %v60, %v65
      %v70 = vsub.f32 %v61, %v66
      %v71 = vsub.f32 %v62, %v67
      %v72 = vsub.f32 %v63, %v68
      %v73 = vand.u32 2147483647, %v69
      %v74 = vand.u32 2147483647, %v70
      %v75 = vand.u32 2147483647, %v71
      %v76 = vand.u32 2147483647, %v72
      %v77 = vmin.f32 %v73, 1.0
      %v78 = vmin.f32 %v74, 1.0
      %v79 = vmin.f32 %v75, 1.0
      %v80 = vmin.f32 %v76, 1.0
      %v81 = vmul.f32 %v77, 0.5
      %v82 = vmul.f32 %v78, 0.5
      %v83 = vmul.f32 %v79, 0.5
      %v84 = vmul.f32 %v80, 0.5
      %v85 = vsub.f32 %v73, %v81
      %v86 = vsub.f32 %v74, %v82
      %v87 = vsub.f32 %v75, %v83
      %v88 = vsub.f32 %v76, %v84
      %v89 = vmul.f32 %v77, %v85
      %v90 = vmul.f32 %v78, %v86
      %v91 = vmul.f32 %v79, %v87
      %v92 = vmul.f32 %v80, %v88
      %v93 = vadd.f32 %v89, %v90
      %v94 = vadd.f32 %v93, %v91
      %v95 = vadd.f32 %v94, %v92
      %v96 = vrot.slane %v95, 4
      %v97 = vadd.f32 %v95, %v96
      %v98 = vrot.slane %v97, 2
      %v99 = vadd.f32 %v97, %v98
      %v100 = vrot.slane %v99, 1
      %v101 = vadd.f32 %v99, %v100
      %s102 = sadd.s32 %s59, 2
      %s103 = scalar_lea.vmem [#allocation2], %s102
      %v104 = vld [vmem:[%s103] sm:$0xff]
      %v105 = vld [vmem:[%s103 + $0x8] sm:$0xff]
      %v106 = vld [vmem:[%s103 + $0x10] sm:$0xff]
      %v107 = vld [vmem:[%s103 + $0x18] sm:$0xff]
      %v108 = vsub.f32 %v60, %v104
      %v109 = vsub.f32 %v61, %v105
      %v110 = vsub.f32 %v62, %v106
      %v111 = vsub.f32 %v63, %v107
      %v112 = vand.u32 2147483647, %v108
      %v113 = vand.u32 2147483647, %v109
      %v114 = vand.u32 2147483647, %v110
      %v115 = vand.u32 2147483647, %v111
      %v116 = vmin.f32 %v112, 1.0
      %v117 = vmin.f32 %v113, 1.0
      %v118 = vmin.f32 %v114, 1.0
      %v119 = vmin.f32 %v115, 1.0
      %v120 = vmul.f32 %v116, 0.5
      %v121 = vmul.f32 %v117, 0.5
      %v122 = vmul.f32 %v118, 0.5
      %v123 = vmul.f32 %v119, 0.5
      %v124 = vsub.f32 %v112, %v120
      %v125 = vsub.f32 %v113, %v121
      %v126 = vsub.f32 %v114, %v122
      %v127 = vsub.f32 %v115, %v123
      %v128 = vmul.f32 %v116, %v124
      %v129 = vmul.f32 %v117, %v125
      %v130 = vmul.f32 %v118, %v126
      %v131 = vmul.f32 %v119, %v127
      %v132 = vadd.f32 %v128, %v129
      %v133 = vadd.f32 %v132, %v130
      %v134 = vadd.f32 %v133, %v131
      %v135 = vrot.slane %v134, 4
      %v136 = vadd.f32 %v134, %v135
      %v137 = vrot.slane %v136, 2
      %v138 = vadd.f32 %v136, %v137
      %v139 = vrot.slane %v138, 1
      %v140 = vadd.f32 %v138, %v139
      %v141 = vmin.f32 %v101, %v140
      %s142 = sadd.s32 %s59, 4
      %s143 = scalar_lea.vmem [#allocation2], %s142
      %v144 = vld [vmem:[%s143] sm:$0xff]
      %v145 = vld [vmem:[%s143 + $0x8] sm:$0xff]
      %v146 = vld [vmem:[%s143 + $0x10] sm:$0xff]
      %v147 = vld [vmem:[%s143 + $0x18] sm:$0xff]
      %v148 = vsub.f32 %v60, %v144
      %v149 = vsub.f32 %v61, %v145
      %v150 = vsub.f32 %v62, %v146
      %v151 = vsub.f32 %v63, %v147
      %v152 = vand.u32 2147483647, %v148
      %v153 = vand.u32 2147483647, %v149
      %v154 = vand.u32 2147483647, %v150
      %v155 = vand.u32 2147483647, %v151
      %v156 = vmin.f32 %v152, 1.0
      %v157 = vmin.f32 %v153, 1.0
      %v158 = vmin.f32 %v154, 1.0
      %v159 = vmin.f32 %v155, 1.0
      %v160 = vmul.f32 %v156, 0.5
      %v161 = vmul.f32 %v157, 0.5
      %v162 = vmul.f32 %v158, 0.5
      %v163 = vmul.f32 %v159, 0.5
      %v164 = vsub.f32 %v152, %v160
      %v165 = vsub.f32 %v153, %v161
      %v166 = vsub.f32 %v154, %v162
      %v167 = vsub.f32 %v155, %v163
      %v168 = vmul.f32 %v156, %v164
      %v169 = vmul.f32 %v157, %v165
      %v170 = vmul.f32 %v158, %v166
      %v171 = vmul.f32 %v159, %v167
      %v172 = vadd.f32 %v168, %v169
      %v173 = vadd.f32 %v172, %v170
      %v174 = vadd.f32 %v173, %v171
      %v175 = vrot.slane %v174, 4
      %v176 = vadd.f32 %v174, %v175
      %v177 = vrot.slane %v176, 2
      %v178 = vadd.f32 %v176, %v177
      %v179 = vrot.slane %v178, 1
      %v180 = vadd.f32 %v178, %v179
      %v181 = vmin.f32 %v141, %v180
      %s182 = sadd.s32 %s59, 6
      %s183 = scalar_lea.vmem [#allocation2], %s182
      %v184 = vld [vmem:[%s183] sm:$0xff]
      %v185 = vld [vmem:[%s183 + $0x8] sm:$0xff]
      %v186 = vld [vmem:[%s183 + $0x10] sm:$0xff]
      %v187 = vld [vmem:[%s183 + $0x18] sm:$0xff]
      %v188 = vsub.f32 %v60, %v184
      %v189 = vsub.f32 %v61, %v185
      %v190 = vsub.f32 %v62, %v186
      %v191 = vsub.f32 %v63, %v187
      %v192 = vand.u32 2147483647, %v188
      %v193 = vand.u32 2147483647, %v189
      %v194 = vand.u32 2147483647, %v190
      %v195 = vand.u32 2147483647, %v191
      %v196 = vmin.f32 %v192, 1.0
      %v197 = vmin.f32 %v193, 1.0
      %v198 = vmin.f32 %v194, 1.0
      %v199 = vmin.f32 %v195, 1.0
      %v200 = vmul.f32 %v196, 0.5
      %v201 = vmul.f32 %v197, 0.5
      %v202 = vmul.f32 %v198, 0.5
      %v203 = vmul.f32 %v199, 0.5
      %v204 = vsub.f32 %v192, %v200
      %v205 = vsub.f32 %v193, %v201
      %v206 = vsub.f32 %v194, %v202
      %v207 = vsub.f32 %v195, %v203
      %v208 = vmul.f32 %v196, %v204
      %v209 = vmul.f32 %v197, %v205
      %v210 = vmul.f32 %v198, %v206
      %v211 = vmul.f32 %v199, %v207
      %v212 = vadd.f32 %v208, %v209
      %v213 = vadd.f32 %v212, %v210
      %v214 = vadd.f32 %v213, %v211
      %v215 = vrot.slane %v214, 4
      %v216 = vadd.f32 %v214, %v215
      %v217 = vrot.slane %v216, 2
      %v218 = vadd.f32 %v216, %v217
      %v219 = vrot.slane %v218, 1
      %v220 = vadd.f32 %v218, %v219
      %v221 = vmin.f32 %v181, %v220
      %v222 = vld [vmem:[#allocation3] sm:$0x1]
      %v223 = vmin.f32 %v222, %v221
      %224 = vst [vmem:[#allocation3] sm:$0x1] %v223
    $region22: #{tpu_custom_call.1} parent=1 // loop_footer
      %s58 = sadd.s32 1, %s54
    $region23: #{tpu_custom_call.1} parent=1 // loop_footer_branch
      %53 = sbr.rel target = $region19
    $region24: #{tpu_custom_call.1} parent=1 // loop_exit
      _
    %v225 = vld [vmem:[#allocation3] sm:$0x1]
    %v226 = vmul.f32 %v225, 0.0625
    %227 = vst [vmem:[#allocation9] sm:$0x1] %v226
    // Predicated region
    $region25: #{tpu_custom_call.1} parent=1 // pred_check
      _
    $region26: #{tpu_custom_call.1} parent=1 // pred_check_branch
      %229 = sbr.rel (0) target = $region28
    $region27: #{tpu_custom_call.1} parent=1 // pred_region
      %s231 = ssub.s32 16, 16
      %232 = vsyncadd [#allocation6], %s231
      %s234 = sshll.u32 [#allocation9], 4
      %s235 = int_to_ptr.vmem [resolvable:$true] %s234
      %237 = dma.vmem_to_hbm [thread:$0]  %s235, 16, %s2, [#allocation6]
    $region28: #{tpu_custom_call.1} parent=1 // pred_fallthru
      _
    // Predicated region
    $region29: #{tpu_custom_call.1} parent=1 // pred_check
      _
    $region30: #{tpu_custom_call.1} parent=1 // pred_check_branch
      %239 = sbr.rel (0) target = $region32
    $region31: #{tpu_custom_call.1} parent=1 // pred_region
      %240 = dma.done [#allocation6], 16
    $region32: #{tpu_custom_call.1} parent=1 // pred_fallthru
      _
    %241 = vsyncpa [#allocation5], 1
    %242 = vsyncpa [#allocation8], 1
    %243 = vsyncpa [#allocation6], 1

</llo_original>
